<compile_context>
chip_gen: v7x
topology: tpu7x:2x2x1
jax: 0.10.0
libtpu: 0.0.40
codegen_flags: <defaults>
</compile_context>

<pallas_src>
import functools

import jax
import jax.numpy as jnp
from jax.experimental import pallas as pl
from jax.experimental.pallas import tpu as pltpu

LANE = 128        # lane width: hidden/output feature dims are zero-padded to this
ROW_ALIGN = 16    # bf16 packs 2 rows per sublane -> keep slab segments 16-row aligned
B_TILE = 128      # batch tile (MXU M dimension); weights stay resident across tiles


def _round_up(n, m):
    return ((n + m - 1) // m) * m


def _make_kernel(k1, k2, k3, o_w1, o_w2, o_w3, o_b):
    """k1/k2/k3: padded fan-ins of the 3 layers; o_*: static slab row offsets."""

    def kernel(x_ref, p_ref, out_ref):
        # Activations in bf16 (MXU-native on v5e/v6e/v7x); accumulate in f32.
        x = x_ref[...].astype(jnp.bfloat16)                     # (B_TILE, k1)
        w1 = p_ref[o_w1:o_w1 + k1, :]                           # (k1, 128) bf16
        w2 = p_ref[o_w2:o_w2 + k2, :]                           # (k2, 128) bf16
        w3 = p_ref[o_w3:o_w3 + k3, :]                           # (k3, 128) bf16
        b1 = p_ref[o_b + 0:o_b + 1, :].astype(jnp.float32)      # (1, 128)
        b2 = p_ref[o_b + 1:o_b + 2, :].astype(jnp.float32)
        b3 = p_ref[o_b + 2:o_b + 3, :].astype(jnp.float32)

        h1 = jnp.maximum(
            jnp.dot(x, w1, preferred_element_type=jnp.float32) + b1, 0.0)
        h1 = h1[:, :k2].astype(jnp.bfloat16)                    # contract only real fan-in
        h2 = jnp.maximum(
            jnp.dot(h1, w2, preferred_element_type=jnp.float32) + b2, 0.0)
        h2 = h2[:, :k3].astype(jnp.bfloat16)
        out_ref[...] = (
            jnp.dot(h2, w3, preferred_element_type=jnp.float32) + b3
        ).astype(out_ref.dtype)

    return kernel


def pack_params(params, n_state, n_fc1, n_fc2, n_action):
    """Pack all linear-layer params into ONE bf16, lane-padded (rows, 128) slab.

    Segments (16-row aligned): w1 (k1 rows) | w2 (k2 rows) | w3 (k3 rows) |
    biases (16 rows: row0=b1, row1=b2, row2=b3).  Feature dims are zero-padded
    to 128 lanes; fan-ins are padded only to the 16-row bf16 tile, so no
    structurally-zero 128-row weight blocks are DMA'd.
    """
    assert n_fc1 <= LANE and n_fc2 <= LANE and n_action <= LANE
    k1 = _round_up(n_state, ROW_ALIGN)
    k2 = _round_up(n_fc1, ROW_ALIGN)
    k3 = _round_up(n_fc2, ROW_ALIGN)
    o_w1, o_w2, o_w3 = 0, k1, k1 + k2
    o_b = k1 + k2 + k3
    rows = o_b + ROW_ALIGN

    slab = jnp.zeros((rows, LANE), jnp.float32)
    slab = slab.at[o_w1:o_w1 + n_state, :n_fc1].set(params["w1"])
    slab = slab.at[o_w2:o_w2 + n_fc1, :n_fc2].set(params["w2"])
    slab = slab.at[o_w3:o_w3 + n_fc2, :n_action].set(params["w3"])
    slab = slab.at[o_b + 0, :n_fc1].set(params["b1"])
    slab = slab.at[o_b + 1, :n_fc2].set(params["b2"])
    slab = slab.at[o_b + 2, :n_action].set(params["b3"])
    slab = slab.astype(jnp.bfloat16)

    meta = dict(k1=k1, k2=k2, k3=k3, o_w1=o_w1, o_w2=o_w2, o_w3=o_w3,
                o_b=o_b, rows=rows, n_action=n_action)
    return slab, meta


def prepare_policy(params, n_state, n_fc1, n_fc2, n_action):
    """One-time (per policy update) prep: pack slab + precompute std."""
    slab, meta = pack_params(params, n_state, n_fc1, n_fc2, n_action)
    std = jnp.exp(params["log_std"])          # input-independent; hoisted out
    return slab, std, meta


def ppo_policy_forward(x, slab, std, *, meta):
    """x: (B, n_state) f32; slab/std from prepare_policy.

    Returns (mean: (B, n_action), std: (n_action,)) matching the PyTorch module.
    """
    B, n_state = x.shape
    k1, k2, k3 = meta["k1"], meta["k2"], meta["k3"]
    rows, n_action = meta["rows"], meta["n_action"]

    # Pad feature dim to k1 (extra columns hit zero w1 rows -> exact).
    if n_state < k1:
        x = jnp.pad(x, ((0, 0), (0, k1 - n_state)))
    # Pad batch to a multiple of B_TILE (extra rows are sliced off below).
    b_pad = _round_up(max(B, 1), B_TILE)
    if b_pad != B:
        x = jnp.pad(x, ((0, b_pad - B), (0, 0)))
    n_tiles = b_pad // B_TILE

    kernel = _make_kernel(k1, k2, k3,
                          meta["o_w1"], meta["o_w2"], meta["o_w3"], meta["o_b"])

    flops = 2 * b_pad * (k1 + k2 + k3) * LANE
    bytes_accessed = (x.size * x.dtype.itemsize
                      + slab.size * slab.dtype.itemsize
                      + b_pad * LANE * 4)

    mean_pad = pl.pallas_call(
        kernel,
        out_shape=jax.ShapeDtypeStruct((b_pad, LANE), jnp.float32),
        grid=(n_tiles,),
        in_specs=[
            pl.BlockSpec((B_TILE, k1), lambda b: (b, 0)),      # streamed batch tile
            pl.BlockSpec((rows, LANE), lambda b: (0, 0)),      # weights: VMEM-resident
        ],
        out_specs=pl.BlockSpec((B_TILE, LANE), lambda b: (b, 0)),  # lane-dense stores
        compiler_params=pltpu.CompilerParams(
            dimension_semantics=("parallel",)),                # use both TCs on v7x
        cost_estimate=pl.CostEstimate(flops=flops, transcendentals=0,
                                      bytes_accessed=bytes_accessed),
    )(x, slab)

    mean = mean_pad[:B, :n_action]
    return mean, std


def init_params(key, n_state, n_action, n_fc1=64, n_fc2=64):
    """Deterministic init mimicking nn.Linear's U(-1/sqrt(fan_in), 1/sqrt(fan_in)).

    Weights are stored transposed relative to PyTorch: (in_features, out_features).
    """
    def linear(key, fan_in, fan_out):
        kw, kb = jax.random.split(key)
        bound = 1.0 / jnp.sqrt(fan_in)
        w = jax.random.uniform(kw, (fan_in, fan_out), jnp.float32, -bound, bound)
        b = jax.random.uniform(kb, (fan_out,), jnp.float32, -bound, bound)
        return w, b

    k1, k2, k3 = jax.random.split(key, 3)
    w1, b1 = linear(k1, n_state, n_fc1)
    w2, b2 = linear(k2, n_fc1, n_fc2)
    w3, b3 = linear(k3, n_fc2, n_action)
    log_std = jnp.zeros((n_action,), jnp.float32)  # nn.Parameter(torch.zeros(n_action))
    return dict(w1=w1, b1=b1, w2=w2, b2=b2, w3=w3, b3=b3, log_std=log_std)


def _reference(x, p):
    h1 = jnp.maximum(x @ p["w1"] + p["b1"], 0.0)
    h2 = jnp.maximum(h1 @ p["w2"] + p["b2"], 0.0)
    mean = h2 @ p["w3"] + p["b3"]
    std = jnp.exp(p["log_std"])
    return mean, std


if __name__ == "__main__":
    key = jax.random.PRNGKey(0)
    k_params, k_x = jax.random.split(key)

    # Small model dims (as the module implies); batch raised to fill the MXU
    # M-dimension and exercise the weight-resident batch grid (2 tiles).
    batch, n_state, n_action, n_fc1, n_fc2 = 256, 16, 4, 64, 64
    params = init_params(k_params, n_state, n_action, n_fc1=n_fc1, n_fc2=n_fc2)
    x = jax.random.normal(k_x, (batch, n_state), jnp.float32)

    # One-time prep (per policy update), kept out of the per-step path.
    slab, std, meta = prepare_policy(params, n_state, n_fc1, n_fc2, n_action)
    slab = jax.device_put(slab)

    fwd = jax.jit(functools.partial(ppo_policy_forward, meta=meta))

    mean, std_out = jax.block_until_ready(fwd(x, slab, std))

    mean_ref, std_ref = _reference(x, params)
    assert mean.shape == (batch, n_action) and std_out.shape == (n_action,)
    # bf16 weights/activations (f32 accumulate) vs. f32 reference.
    assert jnp.allclose(mean, mean_ref, atol=3e-2, rtol=3e-2)
    assert jnp.allclose(std_out, std_ref, atol=1e-6, rtol=1e-6)

    # Also exercise a ragged (non-multiple-of-B_TILE) batch through the padding path.
    x_small = jax.random.normal(jax.random.PRNGKey(1), (8, n_state), jnp.float32)
    mean_s, _ = jax.block_until_ready(fwd(x_small, slab, std))
    mean_s_ref, _ = _reference(x_small, params)
    assert mean_s.shape == (8, n_action)
    assert jnp.allclose(mean_s, mean_s_ref, atol=3e-2, rtol=3e-2)

    print("KERNEL_OK")
</pallas_src>

<mosaic_0001>
module attributes {stable_mosaic.version = 11 : i64} {
  func.func @kernel(%arg0: i32, %arg1: memref<128x16xf32, #tpu.memory_space<vmem>>, %arg2: memref<160x128xbf16, #tpu.memory_space<vmem>>, %arg3: memref<128x128xf32, #tpu.memory_space<vmem>>) attributes {dimension_semantics = [#tpu.dimension_semantics<parallel>], iteration_bounds = array<i64: 2>, scalar_prefetch = 0 : i64, scratch_operands = 0 : i64, tpu.core_type = #tpu.core_type<tc>, window_params = [{transform_indices = @transform_0, window_bounds = array<i64: 128, 16>}, {pipeline_mode = #tpu.pipeline_mode<synchronous>, transform_indices = @transform_1, window_bounds = array<i64: 160, 128>}, {transform_indices = @transform_2, window_bounds = array<i64: 128, 128>}]} {
    %c0 = arith.constant 0 : index
    %c0_0 = arith.constant 0 : index
    %0 = vector.load %arg1[%c0, %c0_0] : memref<128x16xf32, #tpu.memory_space<vmem>>, vector<128x16xf32>
    %1 = arith.truncf %0 : vector<128x16xf32> to vector<128x16xbf16>
    %c0_1 = arith.constant 0 : index
    %c0_2 = arith.constant 0 : index
    %2 = vector.load %arg2[%c0_1, %c0_2] : memref<160x128xbf16, #tpu.memory_space<vmem>>, vector<16x128xbf16>
    %c16 = arith.constant 16 : index
    %c0_3 = arith.constant 0 : index
    %3 = vector.load %arg2[%c16, %c0_3] : memref<160x128xbf16, #tpu.memory_space<vmem>>, vector<64x128xbf16>
    %c80 = arith.constant 80 : index
    %c0_4 = arith.constant 0 : index
    %4 = vector.load %arg2[%c80, %c0_4] : memref<160x128xbf16, #tpu.memory_space<vmem>>, vector<64x128xbf16>
    %c144 = arith.constant 144 : index
    %c0_5 = arith.constant 0 : index
    %5 = vector.load %arg2[%c144, %c0_5] : memref<160x128xbf16, #tpu.memory_space<vmem>>, vector<1x128xbf16>
    %6 = arith.extf %5 : vector<1x128xbf16> to vector<1x128xf32>
    %c145 = arith.constant 145 : index
    %c0_6 = arith.constant 0 : index
    %7 = vector.load %arg2[%c145, %c0_6] : memref<160x128xbf16, #tpu.memory_space<vmem>>, vector<1x128xbf16>
    %8 = arith.extf %7 : vector<1x128xbf16> to vector<1x128xf32>
    %c146 = arith.constant 146 : index
    %c0_7 = arith.constant 0 : index
    %9 = vector.load %arg2[%c146, %c0_7] : memref<160x128xbf16, #tpu.memory_space<vmem>>, vector<1x128xbf16>
    %10 = arith.extf %9 : vector<1x128xbf16> to vector<1x128xf32>
    %cst = arith.constant dense<0.000000e+00> : vector<128x128xf32>
    %11 = tpu.matmul %1, %2, %cst {dimension_numbers = #tpu.dot_dimension_numbers<[1], [0], [0], [1], [0, 0, 1, 1], [], []>} : vector<128x16xbf16>, vector<16x128xbf16>, vector<128x128xf32> -> vector<128x128xf32>
    %12 = vector.broadcast %6 : vector<1x128xf32> to vector<128x128xf32>
    %13 = arith.addf %11, %12 : vector<128x128xf32>
    %cst_8 = arith.constant 0.000000e+00 : f32
    %14 = vector.broadcast %cst_8 : f32 to vector<128x128xf32>
    %15 = arith.maximumf %13, %14 : vector<128x128xf32>
    %16 = vector.extract_strided_slice %15 {offsets = [0, 0], sizes = [128, 64], strides = [1, 1]} : vector<128x128xf32> to vector<128x64xf32>
    %17 = arith.truncf %16 : vector<128x64xf32> to vector<128x64xbf16>
    %cst_9 = arith.constant dense<0.000000e+00> : vector<128x128xf32>
    %18 = tpu.matmul %17, %3, %cst_9 {dimension_numbers = #tpu.dot_dimension_numbers<[1], [0], [0], [1], [0, 0, 1, 1], [], []>} : vector<128x64xbf16>, vector<64x128xbf16>, vector<128x128xf32> -> vector<128x128xf32>
    %19 = vector.broadcast %8 : vector<1x128xf32> to vector<128x128xf32>
    %20 = arith.addf %18, %19 : vector<128x128xf32>
    %cst_10 = arith.constant 0.000000e+00 : f32
    %21 = vector.broadcast %cst_10 : f32 to vector<128x128xf32>
    %22 = arith.maximumf %20, %21 : vector<128x128xf32>
    %23 = vector.extract_strided_slice %22 {offsets = [0, 0], sizes = [128, 64], strides = [1, 1]} : vector<128x128xf32> to vector<128x64xf32>
    %24 = arith.truncf %23 : vector<128x64xf32> to vector<128x64xbf16>
    %cst_11 = arith.constant dense<0.000000e+00> : vector<128x128xf32>
    %25 = tpu.matmul %24, %4, %cst_11 {dimension_numbers = #tpu.dot_dimension_numbers<[1], [0], [0], [1], [0, 0, 1, 1], [], []>} : vector<128x64xbf16>, vector<64x128xbf16>, vector<128x128xf32> -> vector<128x128xf32>
    %26 = vector.broadcast %10 : vector<1x128xf32> to vector<128x128xf32>
    %27 = arith.addf %25, %26 : vector<128x128xf32>
    %c0_12 = arith.constant 0 : index
    %c0_13 = arith.constant 0 : index
    %28 = vector.load %arg3[%c0_12, %c0_13] : memref<128x128xf32, #tpu.memory_space<vmem>>, vector<128x128xf32>
    tpu.vector_store %arg3[%c0_12, %c0_13], %27 {strides = array<i32>} : memref<128x128xf32, #tpu.memory_space<vmem>>, vector<128x128xf32>,
    return
  }
  func.func @transform_0(%arg0: i32) -> (i32, i32) {
    %c0_i32 = arith.constant 0 : i32
    %c0_i32_0 = arith.constant 0 : i32
    return %arg0, %c0_i32 : i32, i32
  }
  func.func @transform_1(%arg0: i32) -> (i32, i32) {
    %c0_i32 = arith.constant 0 : i32
    %c0_i32_0 = arith.constant 0 : i32
    %c0_i32_1 = arith.constant 0 : i32
    return %c0_i32, %c0_i32_0 : i32, i32
  }
  func.func @transform_2(%arg0: i32) -> (i32, i32) {
    %c0_i32 = arith.constant 0 : i32
    %c0_i32_0 = arith.constant 0 : i32
    return %arg0, %c0_i32 : i32, i32
  }
}

</mosaic_0001>

<llo_original>
// kernel: ppo_policy_forward.1
$region0: #{ppo_policy_forward.1}
  #allocation0 [shape = 'u32[]', space=smem, size = 0x4, offset = 0x4, fixed_abs, tag = 'smem constant byte address 0x4 - core index']
  #allocation1 [shape = 'u32[144,128]{1,0:T(1,128)}', space=vmem, size = 0x12000, scoped, tag = 'internal scratch']
  %s0 = inlined_call_operand.vmem [shape: f32[256,16], index: 0, kind: input, shape index: {}]
  %s1 = inlined_call_operand.vmem [shape: bf16[160,128], index: 1, kind: input, shape index: {}]
  %s2 = inlined_call_operand.vmem [shape: f32[256,128], index: 2, kind: output, shape index: {}]
  %s3 = sld [smem:[#allocation0]]
  $region41: #{ppo_policy_forward.1} parent=0
    _
  %s5 = ssub.s32 1, %s3
  %s6 = scalar_select 0, %s5, %s3
  loop: start=0, step=1, limit=4
  $region2: #{ppo_policy_forward.1} parent=0 // loop_pre_header
    _
  $region3: #{ppo_policy_forward.1} parent=0 // loop_header
    %s8 = sphi 0, %s12
    %p9 = scmp.ge.s32.totalorder %s8, 4
    %s18 = sphi 0, %s20
    %s21 = sphi 0, %s18
    %s22 = sphi 0, %s21
    %s38 = sphi 0, %s22
    %s42 = sphi 0, %s42
    %s44 = sphi 0, %s42
    %s45 = sphi 0, %s44
    %s59 = sphi 0, %s45
    %s65 = sphi 0, %s67
    %s68 = sphi 0, %s65
    %s69 = sphi 0, %s68
    %s85 = sphi 0, %s69
  $region4: #{ppo_policy_forward.1} parent=0 // loop_header_branch
    %11 = sbr.rel (%p9) target = $region8
  $region5: #{ppo_policy_forward.1} parent=0 // loop_body
    %s13 = ssub.s32 %s8, 1
    %s14 = ssub.s32 %s8, 2
    %s15 = sadd.s32 %s8, 1
    %s16 = ssub.s32 %s8, %s15
    %p17 = scmp.eq.s32.totalorder %s16, 0
    %s19 = sadd.s32 %s18, 1
    %s20 = scalar_select %p17, %s18, %s19
    %p23 = pneg %p17
    %p24 = scmp.eq.s32.totalorder %s8, 1
    %p25 = por %p23, %p24
    %p26 = scmp.ne.s32.totalorder %s18, %s21
    %p27 = scmp.eq.s32.totalorder %s8, 0
    %p28 = por %p26, %p27
    %p29 = scmp.ne.s32.totalorder %s18, %s21
    %p30 = scmp.eq.s32.totalorder %s13, 1
    %p31 = por %p29, %p30
    %p32 = scmp.ne.s32.totalorder %s21, %s22
    %p33 = scmp.eq.s32.totalorder %s13, 0
    %p34 = por %p32, %p33
    %p35 = scmp.ne.s32.totalorder %s21, %s22
    %p36 = scmp.eq.s32.totalorder %s14, 1
    %p37 = por %p35, %p36
    %p39 = scmp.ne.s32.totalorder %s22, %s38
    %p40 = scmp.eq.s32.totalorder %s14, 0
    %p41 = por %p39, %p40
    %s43 = sadd.s32 %s42, 1
    %p46 = scmp.eq.s32.totalorder %s8, 1
    %p47 = scmp.ne.s32.totalorder %s42, %s44
    %p48 = scmp.eq.s32.totalorder %s8, 0
    %p49 = por %p47, %p48
    %p50 = scmp.ne.s32.totalorder %s42, %s44
    %p51 = scmp.eq.s32.totalorder %s13, 1
    %p52 = por %p50, %p51
    %p53 = scmp.ne.s32.totalorder %s44, %s45
    %p54 = scmp.eq.s32.totalorder %s13, 0
    %p55 = por %p53, %p54
    %p56 = scmp.ne.s32.totalorder %s44, %s45
    %p57 = scmp.eq.s32.totalorder %s14, 1
    %p58 = por %p56, %p57
    %p60 = scmp.ne.s32.totalorder %s45, %s59
    %p61 = scmp.eq.s32.totalorder %s14, 0
    %p62 = por %p60, %p61
    %s63 = ssub.s32 %s8, %s15
    %p64 = scmp.eq.s32.totalorder %s63, 0
    %s66 = sadd.s32 %s65, 1
    %s67 = scalar_select %p64, %s65, %s66
    %p70 = pneg %p64
    %p71 = scmp.eq.s32.totalorder %s8, 1
    %p72 = por %p70, %p71
    %p73 = scmp.ne.s32.totalorder %s65, %s68
    %p74 = scmp.eq.s32.totalorder %s8, 0
    %p75 = por %p73, %p74
    %p76 = scmp.ne.s32.totalorder %s65, %s68
    %p77 = scmp.eq.s32.totalorder %s13, 1
    %p78 = por %p76, %p77
    %p79 = scmp.ne.s32.totalorder %s68, %s69
    %p80 = scmp.eq.s32.totalorder %s13, 0
    %p81 = por %p79, %p80
    %p82 = scmp.ne.s32.totalorder %s68, %s69
    %p83 = scmp.eq.s32.totalorder %s14, 1
    %p84 = por %p82, %p83
    %p86 = scmp.ne.s32.totalorder %s69, %s85
    %p87 = scmp.eq.s32.totalorder %s14, 0
    %p88 = por %p86, %p87
    %p89 = scmp.le.s32.totalorder 1, %s8
    %p90 = scmp.lt.s32.totalorder %s8, 3
    %p91 = pnand %p89, %p90
    %p92 = pneg %p91
    // Predicated region
    $region9: #{ppo_policy_forward.1} parent=5 // pred_check
      _
    $region10: #{ppo_policy_forward.1} parent=5 // pred_check_branch
      %94 = sbr.rel (%p91) target = $region12
    $region11: #{ppo_policy_forward.1} parent=5 // pred_region
      %s95 = ssub.s32 %s8, 1
      // Predicated region
      $region13: #{ppo_policy_forward.1} parent=11 // pred_check
        %p96 = pneg %p55
      $region14: #{ppo_policy_forward.1} parent=11 // pred_check_branch
        %98 = sbr.rel (%p96) target = $region16
      $region15: #{ppo_policy_forward.1} parent=11 // pred_region
        _
      $region16: #{ppo_policy_forward.1} parent=11 // pred_fallthru
        _
    $region12: #{ppo_policy_forward.1} parent=5 // pred_fallthru
      _
    %p99 = scmp.lt.s32.totalorder %s8, 2
    // Predicated region
    $region17: #{ppo_policy_forward.1} parent=5 // pred_check
      %p100 = pneg %p99
    $region18: #{ppo_policy_forward.1} parent=5 // pred_check_branch
      %102 = sbr.rel (%p100) target = $region20
    $region19: #{ppo_policy_forward.1} parent=5 // pred_region
      // Predicated region
      $region21: #{ppo_policy_forward.1} parent=19 // pred_check
        %p103 = pneg %p28
      $region22: #{ppo_policy_forward.1} parent=19 // pred_check_branch
        %105 = sbr.rel (%p103) target = $region24
      $region23: #{ppo_policy_forward.1} parent=19 // pred_region
        %s106 = smul.u32 16, %s8
        %p107 = scmp.lt.s32.totalorder %s106, 31
        %s108 = scalar_select %p107, %s106, 31
        %s109 = smul.addr %s108, 8
        %s110 = scalar_lea.vmem %s0, %s109
        %s111 = smul.u32 16, %s8
      $region24: #{ppo_policy_forward.1} parent=19 // pred_fallthru
        _
    $region20: #{ppo_policy_forward.1} parent=5 // pred_fallthru
      _
    %p112 = scmp.le.s32.totalorder 1, %s8
    %p113 = scmp.lt.s32.totalorder %s8, 3
    %p114 = pnand %p112, %p113
    %p115 = pneg %p114
    // Predicated region
    $region25: #{ppo_policy_forward.1} parent=5 // pred_check
      _
    $region26: #{ppo_policy_forward.1} parent=5 // pred_check_branch
      %117 = sbr.rel (%p114) target = $region28
    $region27: #{ppo_policy_forward.1} parent=5 // pred_region
      %s118 = ssub.s32 %s8, 1
      %s119 = smul.u32 16, %s13
      %p120 = scmp.lt.s32.totalorder %s119, 31
      %s121 = scalar_select %p120, %s119, 31
      %s122 = smul.addr %s121, 8
      %s123 = scalar_lea.vmem %s0, %s122
      %p124 = pneg %p34
      %p125 = pneg %p31
      %p126 = pneg %p55
      %p127 = pneg %p52
      %p128 = pneg %p81
      %p129 = pneg %p78
      %s130 = smul.u32 16, %s13
      %p131 = scmp.lt.s32.totalorder %s130, 31
      %s132 = scalar_select %p131, %s130, 31
      %s133 = smul.addr %s132, 8
      %s134 = scalar_lea.vmem %s2, %s133
      %s135 = smul.u32 16, %s13
      %p136 = scmp.lt.s32.totalorder %s135, 31
      %s137 = scalar_select %p136, %s135, 31
      %s138 = smul.addr %s137, 8
      %s139 = scalar_lea.vmem %s0, %s138
      %s140 = smul.u32 16, %s13
      %s141 = smul.u32 16, %s13
      %p142 = scmp.lt.s32.totalorder %s141, 31
      %s143 = scalar_select %p142, %s141, 31
      %s144 = smul.addr %s143, 8
      %s145 = scalar_lea.vmem %s2, %s144
      %s146 = smul.u32 16, %s13
      %v148 = vld [vmem:[%s139] sm:$0xff]
      %v149 = vld [vmem:[%s139 + $0x8] sm:$0xff]
      %v150 = vld [vmem:[%s139 + $0x10] sm:$0xff]
      %v151 = vld [vmem:[%s139 + $0x18] sm:$0xff]
      %v152 = vld [vmem:[%s139 + $0x20] sm:$0xff]
      %v153 = vld [vmem:[%s139 + $0x28] sm:$0xff]
      %v154 = vld [vmem:[%s139 + $0x30] sm:$0xff]
      %v155 = vld [vmem:[%s139 + $0x38] sm:$0xff]
      %v156 = vld [vmem:[%s139 + $0x40] sm:$0xff]
      %v157 = vld [vmem:[%s139 + $0x48] sm:$0xff]
      %v158 = vld [vmem:[%s139 + $0x50] sm:$0xff]
      %v159 = vld [vmem:[%s139 + $0x58] sm:$0xff]
      %v160 = vld [vmem:[%s139 + $0x60] sm:$0xff]
      %v161 = vld [vmem:[%s139 + $0x68] sm:$0xff]
      %v162 = vld [vmem:[%s139 + $0x70] sm:$0xff]
      %v163 = vld [vmem:[%s139 + $0x78] sm:$0xff]
      %v164 = vpack.c.bf16 %v149, %v148
      %v165 = vpack.c.bf16 %v151, %v150
      %v166 = vpack.c.bf16 %v153, %v152
      %v167 = vpack.c.bf16 %v155, %v154
      %v168 = vpack.c.bf16 %v157, %v156
      %v169 = vpack.c.bf16 %v159, %v158
      %v170 = vpack.c.bf16 %v161, %v160
      %v171 = vpack.c.bf16 %v163, %v162
      %v172 = vld [vmem:[%s1] sm:$0xf]
      %v173 = vld [vmem:[%s1 + $0x4] sm:$0xf]
      %v174 = vld [vmem:[%s1 + $0x8] sm:$0xf]
      %v175 = vld [vmem:[%s1 + $0xc] sm:$0xf]
      %v176 = vld [vmem:[%s1 + $0x10] sm:$0xf]
      %v177 = vld [vmem:[%s1 + $0x14] sm:$0xf]
      %v178 = vld [vmem:[%s1 + $0x18] sm:$0xf]
      %v179 = vld [vmem:[%s1 + $0x1c] sm:$0xf]
      %v180 = vld [vmem:[%s1 + $0x20] sm:$0xf]
      %v181 = vld [vmem:[%s1 + $0x24] sm:$0xf]
      %v182 = vld [vmem:[%s1 + $0x28] sm:$0xf]
      %v183 = vld [vmem:[%s1 + $0x2c] sm:$0xf]
      %v184 = vld [vmem:[%s1 + $0x30] sm:$0xf]
      %v185 = vld [vmem:[%s1 + $0x34] sm:$0xf]
      %v186 = vld [vmem:[%s1 + $0x38] sm:$0xf]
      %v187 = vld [vmem:[%s1 + $0x3c] sm:$0xf]
      %v188 = vld [vmem:[%s1 + $0x40] sm:$0xf]
      %v189 = vld [vmem:[%s1 + $0x44] sm:$0xf]
      %v190 = vld [vmem:[%s1 + $0x48] sm:$0x1]
      %v191 = vunpack.c.l.bf16 %v190
      %v192 = vld [vmem:[%s1 + $0x48] sm:$0x2]
      %v193 = vunpack.c.l.bf16 %v192
      %v194 = vlaneseq
      %v195 = vshrl.u32 %v194, 7
      %v196 = vsub.s32 0, %v195
      %v197 = vrot.slane %v191, %v196
      %v200 = vunpack.c.l.b16 %v172
      %v201 = vunpack.c.l.b16 %v173
      %v202 = vpack.c.b16 %v201, %v200
      %vm204 = vcmask 130048
      %v206 = vsel %vm204, %v164, 0
      %v209 = vsel %vm204, %v165, 0
      %v212 = vsel %vm204, %v166, 0
      %v215 = vsel %vm204, %v167, 0
      %v218 = vsel %vm204, %v168, 0
      %v221 = vsel %vm204, %v169, 0
      %v224 = vsel %vm204, %v170, 0
      %v227 = vsel %vm204, %v171, 0
      %229 = vmatprep.subr.bf16.mxu0 0
      %230 = vmatpush1.bf16.msra.mxu0 %v202
      %231 = vmatprep.subr.bf16.mxu0 0
      %232 = vmatpush1.bf16.msra.mxu0 0
      %233 = vmatprep.subr.bf16.mxu0 0
      %234 = vmatpush1.bf16.msra.mxu0 0
      %235 = vmatprep.subr.bf16.mxu0 0
      %236 = vmatpush1.bf16.msra.mxu0 0
      %237 = vmatprep.subr.bf16.mxu0 0
      %238 = vmatpush1.bf16.msra.mxu0 0
      %239 = vmatprep.subr.bf16.mxu0 0
      %240 = vmatpush1.bf16.msra.mxu0 0
      %241 = vmatprep.subr.bf16.mxu0 0
      %242 = vmatpush1.bf16.msra.mxu0 0
      %243 = vmatprep.subr.bf16.mxu0 0
      %244 = vmatpush1.bf16.msra.mxu0 0
      %245 = vmatprep.subr.bf16.mxu0 0
      %246 = vmatpush1.bf16.msra.mxu0 0
      %247 = vmatprep.subr.bf16.mxu0 0
      %248 = vmatpush1.bf16.msra.mxu0 0
      %249 = vmatprep.subr.bf16.mxu0 0
      %250 = vmatpush1.bf16.msra.mxu0 0
      %251 = vmatprep.subr.bf16.mxu0 0
      %252 = vmatpush1.bf16.msra.mxu0 0
      %253 = vmatprep.subr.bf16.mxu0 0
      %254 = vmatpush1.bf16.msra.mxu0 0
      %255 = vmatprep.subr.bf16.mxu0 0
      %256 = vmatpush1.bf16.msra.mxu0 0
      %257 = vmatprep.subr.bf16.mxu0 0
      %258 = vmatpush1.bf16.msra.mxu0 0
      %259 = vmatprep.subr.bf16.mxu0 0
      %260 = vmatpush1.bf16.msra.mxu0 0
      %261 = vmatprep.mubr.bf16.mxu0 0
      %262 = vmatmul.mubr.bf16.gmra.mrb[0].mxu0 %v206
      %v263 = vpop.f32.mrb[0].mxu0
      %v264 = vadd.f32 %v197, %v263
      %v265 = vpop.f32.mrb[0].mxu0
      %v266 = vpop.f32.mrb[0].mxu0
      %v267 = vadd.f32 %v197, %v266
      %v268 = vpop.f32.mrb[0].mxu0
      %269 = vmatprep.mubr.bf16.mxu0 0
      %270 = vmatmul.mubr.bf16.gmra.mrb[0].mxu0 %v209
      %v271 = vpop.f32.mrb[0].mxu0
      %v272 = vadd.f32 %v197, %v271
      %v273 = vpop.f32.mrb[0].mxu0
      %v274 = vpop.f32.mrb[0].mxu0
      %v275 = vadd.f32 %v197, %v274
      %v276 = vpop.f32.mrb[0].mxu0
      %277 = vmatprep.mubr.bf16.mxu0 0
      %278 = vmatmul.mubr.bf16.gmra.mrb[0].mxu0 %v212
      %v279 = vpop.f32.mrb[0].mxu0
      %v280 = vadd.f32 %v197, %v279
      %v281 = vpop.f32.mrb[0].mxu0
      %v282 = vpop.f32.mrb[0].mxu0
      %v283 = vadd.f32 %v197, %v282
      %v284 = vpop.f32.mrb[0].mxu0
      %285 = vmatprep.mubr.bf16.mxu0 0
      %286 = vmatmul.mubr.bf16.gmra.mrb[0].mxu0 %v215
      %v287 = vpop.f32.mrb[0].mxu0
      %v288 = vadd.f32 %v197, %v287
      %v289 = vpop.f32.mrb[0].mxu0
      %v290 = vpop.f32.mrb[0].mxu0
      %v291 = vadd.f32 %v197, %v290
      %v292 = vpop.f32.mrb[0].mxu0
      %293 = vmatprep.mubr.bf16.mxu0 0
      %294 = vmatmul.mubr.bf16.gmra.mrb[0].mxu0 %v218
      %v295 = vpop.f32.mrb[0].mxu0
      %v296 = vadd.f32 %v197, %v295
      %v297 = vpop.f32.mrb[0].mxu0
      %v298 = vpop.f32.mrb[0].mxu0
      %v299 = vadd.f32 %v197, %v298
      %v300 = vpop.f32.mrb[0].mxu0
      %301 = vmatprep.mubr.bf16.mxu0 0
      %302 = vmatmul.mubr.bf16.gmra.mrb[0].mxu0 %v221
      %v303 = vpop.f32.mrb[0].mxu0
      %v304 = vadd.f32 %v197, %v303
      %v305 = vpop.f32.mrb[0].mxu0
      %v306 = vpop.f32.mrb[0].mxu0
      %v307 = vadd.f32 %v197, %v306
      %v308 = vpop.f32.mrb[0].mxu0
      %309 = vmatprep.mubr.bf16.mxu0 0
      %310 = vmatmul.mubr.bf16.gmra.mrb[0].mxu0 %v224
      %v311 = vpop.f32.mrb[0].mxu0
      %v312 = vadd.f32 %v197, %v311
      %v313 = vpop.f32.mrb[0].mxu0
      %v314 = vpop.f32.mrb[0].mxu0
      %v315 = vadd.f32 %v197, %v314
      %v316 = vpop.f32.mrb[0].mxu0
      %317 = vmatprep.mubr.bf16.mxu0 0
      %318 = vmatmul.mubr.bf16.gmra.mrb[0].mxu0 %v227
      %v319 = vpop.f32.mrb[0].mxu0
      %v320 = vadd.f32 %v197, %v319
      %v321 = vpop.f32.mrb[0].mxu0
      %v322 = vpop.f32.mrb[0].mxu0
      %v323 = vadd.f32 %v197, %v322
      %v324 = vpop.f32.mrb[0].mxu0
      %325 = vdwg.mxu0
      %v326 = vmax.f32 %v264, 0.0
      %v327 = vmax.f32 %v267, 0.0
      %v328 = vmax.f32 %v272, 0.0
      %v329 = vmax.f32 %v275, 0.0
      %v330 = vmax.f32 %v280, 0.0
      %v331 = vmax.f32 %v283, 0.0
      %v332 = vmax.f32 %v288, 0.0
      %v333 = vmax.f32 %v291, 0.0
      %v334 = vmax.f32 %v296, 0.0
      %v335 = vmax.f32 %v299, 0.0
      %v336 = vmax.f32 %v304, 0.0
      %v337 = vmax.f32 %v307, 0.0
      %v338 = vmax.f32 %v312, 0.0
      %v339 = vmax.f32 %v315, 0.0
      %v340 = vmax.f32 %v320, 0.0
      %v341 = vmax.f32 %v323, 0.0
      %v342 = vpack.c.bf16 %v327, %v326
      %v343 = vpack.c.bf16 %v329, %v328
      %v344 = vpack.c.bf16 %v331, %v330
      %v345 = vpack.c.bf16 %v333, %v332
      %v346 = vpack.c.bf16 %v335, %v334
      %v347 = vpack.c.bf16 %v337, %v336
      %v348 = vpack.c.bf16 %v339, %v338
      %v349 = vpack.c.bf16 %v341, %v340
      %v350 = vlaneseq
      %v351 = vshrl.u32 %v350, 7
      %v352 = vsub.s32 1, %v351
      %v353 = vrot.slane %v191, %v352
      %v362 = vunpack.c.l.b16 %v174
      %v363 = vunpack.c.l.b16 %v175
      %v364 = vunpack.c.l.b16 %v176
      %v365 = vunpack.c.l.b16 %v177
      %v366 = vunpack.c.l.b16 %v178
      %v367 = vunpack.c.l.b16 %v179
      %v368 = vunpack.c.l.b16 %v180
      %v369 = vunpack.c.l.b16 %v181
      %v370 = vpack.c.b16 %v363, %v362
      %v371 = vpack.c.b16 %v365, %v364
      %v372 = vpack.c.b16 %v367, %v366
      %v373 = vpack.c.b16 %v369, %v368
      %vm378 = vcmask 523264
      %v380 = vsel %vm378, %v342, 0
      %v383 = vsel %vm378, %v343, 0
      %v386 = vsel %vm378, %v344, 0
      %v389 = vsel %vm378, %v345, 0
      %v392 = vsel %vm378, %v346, 0
      %v395 = vsel %vm378, %v347, 0
      %v398 = vsel %vm378, %v348, 0
      %v401 = vsel %vm378, %v349, 0
      %403 = vmatprep.subr.bf16.mxu0 0
      %404 = vmatpush1.bf16.msra.mxu0 %v370
      %405 = vmatprep.subr.bf16.mxu0 0
      %406 = vmatpush1.bf16.msra.mxu0 %v371
      %407 = vmatprep.subr.bf16.mxu0 0
      %408 = vmatpush1.bf16.msra.mxu0 %v372
      %409 = vmatprep.subr.bf16.mxu0 0
      %410 = vmatpush1.bf16.msra.mxu0 %v373
      %411 = vmatprep.subr.bf16.mxu0 0
      %412 = vmatpush1.bf16.msra.mxu0 0
      %413 = vmatprep.subr.bf16.mxu0 0
      %414 = vmatpush1.bf16.msra.mxu0 0
      %415 = vmatprep.subr.bf16.mxu0 0
      %416 = vmatpush1.bf16.msra.mxu0 0
      %417 = vmatprep.subr.bf16.mxu0 0
      %418 = vmatpush1.bf16.msra.mxu0 0
      %419 = vmatprep.subr.bf16.mxu0 0
      %420 = vmatpush1.bf16.msra.mxu0 0
      %421 = vmatprep.subr.bf16.mxu0 0
      %422 = vmatpush1.bf16.msra.mxu0 0
      %423 = vmatprep.subr.bf16.mxu0 0
      %424 = vmatpush1.bf16.msra.mxu0 0
      %425 = vmatprep.subr.bf16.mxu0 0
      %426 = vmatpush1.bf16.msra.mxu0 0
      %427 = vmatprep.subr.bf16.mxu0 0
      %428 = vmatpush1.bf16.msra.mxu0 0
      %429 = vmatprep.subr.bf16.mxu0 0
      %430 = vmatpush1.bf16.msra.mxu0 0
      %431 = vmatprep.subr.bf16.mxu0 0
      %432 = vmatpush1.bf16.msra.mxu0 0
      %433 = vmatprep.subr.bf16.mxu0 0
      %434 = vmatpush1.bf16.msra.mxu0 0
      %435 = vmatprep.mubr.bf16.mxu0 0
      %436 = vmatmul.mubr.bf16.gmra.mrb[0].mxu0 %v380
      %v437 = vpop.f32.mrb[0].mxu0
      %v438 = vadd.f32 %v353, %v437
      %v439 = vpop.f32.mrb[0].mxu0
      %v440 = vpop.f32.mrb[0].mxu0
      %v441 = vadd.f32 %v353, %v440
      %v442 = vpop.f32.mrb[0].mxu0
      %443 = vmatprep.mubr.bf16.mxu0 0
      %444 = vmatmul.mubr.bf16.gmra.mrb[0].mxu0 %v383
      %v445 = vpop.f32.mrb[0].mxu0
      %v446 = vadd.f32 %v353, %v445
      %v447 = vpop.f32.mrb[0].mxu0
      %v448 = vpop.f32.mrb[0].mxu0
      %v449 = vadd.f32 %v353, %v448
      %v450 = vpop.f32.mrb[0].mxu0
      %451 = vmatprep.mubr.bf16.mxu0 0
      %452 = vmatmul.mubr.bf16.gmra.mrb[0].mxu0 %v386
      %v453 = vpop.f32.mrb[0].mxu0
      %v454 = vadd.f32 %v353, %v453
      %v455 = vpop.f32.mrb[0].mxu0
      %v456 = vpop.f32.mrb[0].mxu0
      %v457 = vadd.f32 %v353, %v456
      %v458 = vpop.f32.mrb[0].mxu0
      %459 = vmatprep.mubr.bf16.mxu0 0
      %460 = vmatmul.mubr.bf16.gmra.mrb[0].mxu0 %v389
      %v461 = vpop.f32.mrb[0].mxu0
      %v462 = vadd.f32 %v353, %v461
      %v463 = vpop.f32.mrb[0].mxu0
      %v464 = vpop.f32.mrb[0].mxu0
      %v465 = vadd.f32 %v353, %v464
      %v466 = vpop.f32.mrb[0].mxu0
      %467 = vmatprep.mubr.bf16.mxu0 0
      %468 = vmatmul.mubr.bf16.gmra.mrb[0].mxu0 %v392
      %v469 = vpop.f32.mrb[0].mxu0
      %v470 = vadd.f32 %v353, %v469
      %v471 = vpop.f32.mrb[0].mxu0
      %v472 = vpop.f32.mrb[0].mxu0
      %v473 = vadd.f32 %v353, %v472
      %v474 = vpop.f32.mrb[0].mxu0
      %475 = vmatprep.mubr.bf16.mxu0 0
      %476 = vmatmul.mubr.bf16.gmra.mrb[0].mxu0 %v395
      %v477 = vpop.f32.mrb[0].mxu0
      %v478 = vadd.f32 %v353, %v477
      %v479 = vpop.f32.mrb[0].mxu0
      %v480 = vpop.f32.mrb[0].mxu0
      %v481 = vadd.f32 %v353, %v480
      %v482 = vpop.f32.mrb[0].mxu0
      %483 = vmatprep.mubr.bf16.mxu0 0
      %484 = vmatmul.mubr.bf16.gmra.mrb[0].mxu0 %v398
      %v485 = vpop.f32.mrb[0].mxu0
      %v486 = vadd.f32 %v353, %v485
      %v487 = vpop.f32.mrb[0].mxu0
      %v488 = vpop.f32.mrb[0].mxu0
      %v489 = vadd.f32 %v353, %v488
      %v490 = vpop.f32.mrb[0].mxu0
      %491 = vmatprep.mubr.bf16.mxu0 0
      %492 = vmatmul.mubr.bf16.gmra.mrb[0].mxu0 %v401
      %v493 = vpop.f32.mrb[0].mxu0
      %v494 = vadd.f32 %v353, %v493
      %v495 = vpop.f32.mrb[0].mxu0
      %v496 = vpop.f32.mrb[0].mxu0
      %v497 = vadd.f32 %v353, %v496
      %v498 = vpop.f32.mrb[0].mxu0
      %499 = vdwg.mxu0
      %v500 = vmax.f32 %v438, 0.0
      %v501 = vmax.f32 %v441, 0.0
      %v502 = vmax.f32 %v446, 0.0
      %v503 = vmax.f32 %v449, 0.0
      %v504 = vmax.f32 %v454, 0.0
      %v505 = vmax.f32 %v457, 0.0
      %v506 = vmax.f32 %v462, 0.0
      %v507 = vmax.f32 %v465, 0.0
      %v508 = vmax.f32 %v470, 0.0
      %v509 = vmax.f32 %v473, 0.0
      %v510 = vmax.f32 %v478, 0.0
      %v511 = vmax.f32 %v481, 0.0
      %v512 = vmax.f32 %v486, 0.0
      %v513 = vmax.f32 %v489, 0.0
      %v514 = vmax.f32 %v494, 0.0
      %v515 = vmax.f32 %v497, 0.0
      %v516 = vpack.c.bf16 %v501, %v500
      %v517 = vpack.c.bf16 %v503, %v502
      %v518 = vpack.c.bf16 %v505, %v504
      %v519 = vpack.c.bf16 %v507, %v506
      %v520 = vpack.c.bf16 %v509, %v508
      %v521 = vpack.c.bf16 %v511, %v510
      %v522 = vpack.c.bf16 %v513, %v512
      %v523 = vpack.c.bf16 %v515, %v514
      %v524 = vlaneseq
      %v525 = vshrl.u32 %v524, 7
      %v526 = vsub.s32 2, %v525
      %v527 = vrot.slane %v193, %v526
      %v536 = vunpack.c.l.b16 %v182
      %v537 = vunpack.c.l.b16 %v183
      %v538 = vunpack.c.l.b16 %v184
      %v539 = vunpack.c.l.b16 %v185
      %v540 = vunpack.c.l.b16 %v186
      %v541 = vunpack.c.l.b16 %v187
      %v542 = vunpack.c.l.b16 %v188
      %v543 = vunpack.c.l.b16 %v189
      %v544 = vpack.c.b16 %v537, %v536
      %v545 = vpack.c.b16 %v539, %v538
      %v546 = vpack.c.b16 %v541, %v540
      %v547 = vpack.c.b16 %v543, %v542
      %v553 = vsel %vm378, %v516, 0
      %v556 = vsel %vm378, %v517, 0
      %v559 = vsel %vm378, %v518, 0
      %v562 = vsel %vm378, %v519, 0
      %v565 = vsel %vm378, %v520, 0
      %v568 = vsel %vm378, %v521, 0
      %v571 = vsel %vm378, %v522, 0
      %v574 = vsel %vm378, %v523, 0
      %576 = vmatprep.subr.bf16.mxu0 0
      %577 = vmatpush1.bf16.msra.mxu0 %v544
      %578 = vmatprep.subr.bf16.mxu0 0
      %579 = vmatpush1.bf16.msra.mxu0 %v545
      %580 = vmatprep.subr.bf16.mxu0 0
      %581 = vmatpush1.bf16.msra.mxu0 %v546
      %582 = vmatprep.subr.bf16.mxu0 0
      %583 = vmatpush1.bf16.msra.mxu0 %v547
      %584 = vmatprep.subr.bf16.mxu0 0
      %585 = vmatpush1.bf16.msra.mxu0 0
      %586 = vmatprep.subr.bf16.mxu0 0
      %587 = vmatpush1.bf16.msra.mxu0 0
      %588 = vmatprep.subr.bf16.mxu0 0
      %589 = vmatpush1.bf16.msra.mxu0 0
      %590 = vmatprep.subr.bf16.mxu0 0
      %591 = vmatpush1.bf16.msra.mxu0 0
      %592 = vmatprep.subr.bf16.mxu0 0
      %593 = vmatpush1.bf16.msra.mxu0 0
      %594 = vmatprep.subr.bf16.mxu0 0
      %595 = vmatpush1.bf16.msra.mxu0 0
      %596 = vmatprep.subr.bf16.mxu0 0
      %597 = vmatpush1.bf16.msra.mxu0 0
      %598 = vmatprep.subr.bf16.mxu0 0
      %599 = vmatpush1.bf16.msra.mxu0 0
      %600 = vmatprep.subr.bf16.mxu0 0
      %601 = vmatpush1.bf16.msra.mxu0 0
      %602 = vmatprep.subr.bf16.mxu0 0
      %603 = vmatpush1.bf16.msra.mxu0 0
      %604 = vmatprep.subr.bf16.mxu0 0
      %605 = vmatpush1.bf16.msra.mxu0 0
      %606 = vmatprep.subr.bf16.mxu0 0
      %607 = vmatpush1.bf16.msra.mxu0 0
      %608 = vmatprep.mubr.bf16.mxu0 0
      %609 = vmatmul.mubr.bf16.gmra.mrb[0].mxu0 %v553
      %v610 = vpop.f32.mrb[0].mxu0
      %v611 = vadd.f32 %v527, %v610
      %v612 = vpop.f32.mrb[0].mxu0
      %v613 = vpop.f32.mrb[0].mxu0
      %v614 = vadd.f32 %v527, %v613
      %v615 = vpop.f32.mrb[0].mxu0
      %616 = vmatprep.mubr.bf16.mxu0 0
      %617 = vmatmul.mubr.bf16.gmra.mrb[0].mxu0 %v556
      %v618 = vpop.f32.mrb[0].mxu0
      %v619 = vadd.f32 %v527, %v618
      %v620 = vpop.f32.mrb[0].mxu0
      %v621 = vpop.f32.mrb[0].mxu0
      %v622 = vadd.f32 %v527, %v621
      %v623 = vpop.f32.mrb[0].mxu0
      %624 = vmatprep.mubr.bf16.mxu0 0
      %625 = vmatmul.mubr.bf16.gmra.mrb[0].mxu0 %v559
      %v626 = vpop.f32.mrb[0].mxu0
      %v627 = vadd.f32 %v527, %v626
      %v628 = vpop.f32.mrb[0].mxu0
      %v629 = vpop.f32.mrb[0].mxu0
      %v630 = vadd.f32 %v527, %v629
      %v631 = vpop.f32.mrb[0].mxu0
      %632 = vmatprep.mubr.bf16.mxu0 0
      %633 = vmatmul.mubr.bf16.gmra.mrb[0].mxu0 %v562
      %v634 = vpop.f32.mrb[0].mxu0
      %v635 = vadd.f32 %v527, %v634
      %v636 = vpop.f32.mrb[0].mxu0
      %v637 = vpop.f32.mrb[0].mxu0
      %v638 = vadd.f32 %v527, %v637
      %v639 = vpop.f32.mrb[0].mxu0
      %640 = vmatprep.mubr.bf16.mxu0 0
      %641 = vmatmul.mubr.bf16.gmra.mrb[0].mxu0 %v565
      %v642 = vpop.f32.mrb[0].mxu0
      %v643 = vadd.f32 %v527, %v642
      %v644 = vpop.f32.mrb[0].mxu0
      %v645 = vpop.f32.mrb[0].mxu0
      %v646 = vadd.f32 %v527, %v645
      %v647 = vpop.f32.mrb[0].mxu0
      %648 = vmatprep.mubr.bf16.mxu0 0
      %649 = vmatmul.mubr.bf16.gmra.mrb[0].mxu0 %v568
      %v650 = vpop.f32.mrb[0].mxu0
      %v651 = vadd.f32 %v527, %v650
      %v652 = vpop.f32.mrb[0].mxu0
      %v653 = vpop.f32.mrb[0].mxu0
      %v654 = vadd.f32 %v527, %v653
      %v655 = vpop.f32.mrb[0].mxu0
      %656 = vmatprep.mubr.bf16.mxu0 0
      %657 = vmatmul.mubr.bf16.gmra.mrb[0].mxu0 %v571
      %v658 = vpop.f32.mrb[0].mxu0
      %v659 = vadd.f32 %v527, %v658
      %v660 = vpop.f32.mrb[0].mxu0
      %v661 = vpop.f32.mrb[0].mxu0
      %v662 = vadd.f32 %v527, %v661
      %v663 = vpop.f32.mrb[0].mxu0
      %664 = vmatprep.mubr.bf16.mxu0 0
      %665 = vmatmul.mubr.bf16.gmra.mrb[0].mxu0 %v574
      %v666 = vpop.f32.mrb[0].mxu0
      %v667 = vadd.f32 %v527, %v666
      %v668 = vpop.f32.mrb[0].mxu0
      %v669 = vpop.f32.mrb[0].mxu0
      %v670 = vadd.f32 %v527, %v669
      %v671 = vpop.f32.mrb[0].mxu0
      %672 = vdwg.mxu0
      %673 = vst [vmem:[%s145] sm:$0xff] %v611
      %674 = vst [vmem:[%s145 + $0x8] sm:$0xff] %v614
      %675 = vst [vmem:[%s145 + $0x10] sm:$0xff] %v619
      %676 = vst [vmem:[%s145 + $0x18] sm:$0xff] %v622
      %677 = vst [vmem:[%s145 + $0x20] sm:$0xff] %v627
      %678 = vst [vmem:[%s145 + $0x28] sm:$0xff] %v630
      %679 = vst [vmem:[%s145 + $0x30] sm:$0xff] %v635
      %680 = vst [vmem:[%s145 + $0x38] sm:$0xff] %v638
      %681 = vst [vmem:[%s145 + $0x40] sm:$0xff] %v643
      %682 = vst [vmem:[%s145 + $0x48] sm:$0xff] %v646
      %683 = vst [vmem:[%s145 + $0x50] sm:$0xff] %v651
      %684 = vst [vmem:[%s145 + $0x58] sm:$0xff] %v654
      %685 = vst [vmem:[%s145 + $0x60] sm:$0xff] %v659
      %686 = vst [vmem:[%s145 + $0x68] sm:$0xff] %v662
      %687 = vst [vmem:[%s145 + $0x70] sm:$0xff] %v667
      %688 = vst [vmem:[%s145 + $0x78] sm:$0xff] %v670
      %s689 = smul.u32 16, %s13
      %p690 = scmp.lt.s32.totalorder %s689, 31
      %s691 = scalar_select %p690, %s689, 31
      %s692 = smul.addr %s691, 8
      %s693 = scalar_lea.vmem %s2, %s692
      // Predicated region
      $region29: #{ppo_policy_forward.1} parent=27 // pred_check
        %p694 = pneg %p78
      $region30: #{ppo_policy_forward.1} parent=27 // pred_check_branch
        %696 = sbr.rel (%p694) target = $region32
      $region31: #{ppo_policy_forward.1} parent=27 // pred_region
        %s697 = smul.u32 16, %s13
      $region32: #{ppo_policy_forward.1} parent=27 // pred_fallthru
        _
    $region28: #{ppo_policy_forward.1} parent=5 // pred_fallthru
      _
    %p698 = scmp.le.s32.totalorder 2, %s8
    // Predicated region
    $region33: #{ppo_policy_forward.1} parent=5 // pred_check
      %p699 = pneg %p698
    $region34: #{ppo_policy_forward.1} parent=5 // pred_check_branch
      %701 = sbr.rel (%p699) target = $region36
    $region35: #{ppo_policy_forward.1} parent=5 // pred_region
      %s702 = ssub.s32 %s8, 2
      // Predicated region
      $region37: #{ppo_policy_forward.1} parent=35 // pred_check
        %p703 = pneg %p84
      $region38: #{ppo_policy_forward.1} parent=35 // pred_check_branch
        %705 = sbr.rel (%p703) target = $region40
      $region39: #{ppo_policy_forward.1} parent=35 // pred_region
        %s706 = smul.u32 16, %s14
        %p707 = scmp.lt.s32.totalorder %s706, 31
        %s708 = scalar_select %p707, %s706, 31
        %s709 = smul.addr %s708, 8
        %s710 = scalar_lea.vmem %s2, %s709
      $region40: #{ppo_policy_forward.1} parent=35 // pred_fallthru
        _
    $region36: #{ppo_policy_forward.1} parent=5 // pred_fallthru
      _
  $region6: #{ppo_policy_forward.1} parent=0 // loop_footer
    %s12 = sadd.s32 1, %s8
  $region7: #{ppo_policy_forward.1} parent=0 // loop_footer_branch
    %7 = sbr.rel target = $region3
  $region8: #{ppo_policy_forward.1} parent=0 // loop_exit
    _

</llo_original>
